<compile_context>
chip_gen: v6e
topology: v6e:2x2x1
jax: 0.10.0
libtpu: 0.0.40
codegen_flags: <defaults>
</compile_context>

<pallas_src>
import jax
import jax.numpy as jnp
from jax.experimental import pallas as pl
from jax.experimental.pallas import tpu as pltpu

LANE = 128          # lane width / MXU-friendly padding target
NEG_SLOPE = 0.01    # nn.LeakyReLU() default


def _round_up(x, m):
    return ((x + m - 1) // m) * m


# ---------------------------------------------------------------------------
# Pallas kernel: one batch tile of the whole MLP (3 matmuls + LeakyReLU + log_softmax)
# ---------------------------------------------------------------------------
def _mlp_kernel(x_ref, w0_ref, b0_ref, w1_ref, b1_ref, w2_ref, b2_ref, o_ref):
    neg_slope = jnp.float32(NEG_SLOPE)

    # layer 0: inputs -> hidden, LeakyReLU
    h = jnp.dot(x_ref[...], w0_ref[...], preferred_element_type=jnp.float32)
    h = h + b0_ref[...]
    h = jnp.where(h >= 0, h, neg_slope * h)

    # layer 1: hidden -> hidden, LeakyReLU
    h = jnp.dot(h, w1_ref[...], preferred_element_type=jnp.float32)
    h = h + b1_ref[...]
    h = jnp.where(h >= 0, h, neg_slope * h)

    # output head: hidden -> outputs (padded lanes get bias = -inf)
    logits = jnp.dot(h, w2_ref[...], preferred_element_type=jnp.float32)
    logits = logits + b2_ref[...]

    # log_softmax over last dim; padded lanes are -inf -> exp()=0, no effect.
    m = jnp.max(logits, axis=-1, keepdims=True)
    shifted = logits - m
    lse = jnp.log(jnp.sum(jnp.exp(shifted), axis=-1, keepdims=True))
    o_ref[...] = (shifted - lse).astype(o_ref.dtype)


# ---------------------------------------------------------------------------
# Wrapper: batch-tiled pallas_call with resident weights
# ---------------------------------------------------------------------------
def mlp_forward_pallas(x_flat, padded_params, outputs, *, block_b=256):
    """x_flat: [B, inputs] f32. padded_params: [(W [in_p,out_p], b [1,out_p])]*3."""
    (w0, b0), (w1, b1), (w2, b2) = padded_params
    B, in_dim = x_flat.shape
    in_pad = w0.shape[0]
    out_pad = w2.shape[1]

    # Pad the input feature dim to match the padded weights (zeros contribute 0).
    if in_dim < in_pad:
        x_flat = jnp.pad(x_flat, ((0, 0), (0, in_pad - in_dim)))

    # Batch tile: multiple of 128 (full MXU tiles, sublane-aligned), capped at block_b.
    tb = min(_round_up(block_b, LANE), _round_up(max(B, 1), LANE))
    b_pad = _round_up(B, tb)
    if b_pad > B:
        x_flat = jnp.pad(x_flat, ((0, b_pad - B), (0, 0)))
    grid = (b_pad // tb,)

    # VMEM budget: 2x double-buffered x/out tiles + (double-buffered) resident
    # weights + headroom.  Stays tiny; well under v7x's 64 MiB physical VMEM.
    w_bytes = sum(int(a.size) * a.dtype.itemsize for p in padded_params for a in p)
    act_bytes = 2 * tb * (in_pad + out_pad) * 4
    vmem_limit = min(int(2 * w_bytes + act_bytes + (4 << 20)), 64 << 20)

    out = pl.pallas_call(
        _mlp_kernel,
        out_shape=jax.ShapeDtypeStruct((b_pad, out_pad), jnp.float32),
        grid=grid,
        in_specs=[
            pl.BlockSpec((tb, in_pad), lambda i: (i, 0)),   # streamed activations
            pl.BlockSpec(w0.shape, lambda i: (0, 0)),       # resident weights/biases
            pl.BlockSpec(b0.shape, lambda i: (0, 0)),
            pl.BlockSpec(w1.shape, lambda i: (0, 0)),
            pl.BlockSpec(b1.shape, lambda i: (0, 0)),
            pl.BlockSpec(w2.shape, lambda i: (0, 0)),
            pl.BlockSpec(b2.shape, lambda i: (0, 0)),
        ],
        out_specs=pl.BlockSpec((tb, out_pad), lambda i: (i, 0)),  # lane-dense store
        compiler_params=pltpu.CompilerParams(
            dimension_semantics=("parallel",),
            vmem_limit_bytes=vmem_limit,
        ),
    )(x_flat, w0, b0, w1, b1, w2, b2)

    return out[:B, :outputs]


# ---------------------------------------------------------------------------
# Parameter setup (plain JAX glue): weight_norm + 128-padding outside the kernel.
# weight_norm (dim=0 default): w_eff[o, :] = g[o] * v[o, :] / ||v[o, :]||_2
# ---------------------------------------------------------------------------
def make_weight_norm_linear(key, fan_in, fan_out):
    kv, kg, kb = jax.random.split(key, 3)
    v = jax.random.normal(kv, (fan_out, fan_in), dtype=jnp.float32) * 0.1
    g = 1.0 + 0.1 * jax.random.normal(kg, (fan_out, 1), dtype=jnp.float32)
    b = 0.1 * jax.random.normal(kb, (fan_out,), dtype=jnp.float32)
    norm = jnp.sqrt(jnp.sum(v * v, axis=1, keepdims=True))  # no eps (matches PyTorch)
    w_eff = g * v / norm                       # [out, in]  (PyTorch convention)
    return w_eff.T, b.reshape(1, fan_out)      # store as [in, out], [1, out]


def build_mlp_params(key, inputs, hidden, outputs, layer=2):
    assert layer == 2, "this script instantiates the layer=2 configuration"
    k0, k1, k2 = jax.random.split(key, 3)
    p0 = make_weight_norm_linear(k0, inputs, hidden)   # linear0
    p1 = make_weight_norm_linear(k1, hidden, hidden)   # linear1
    p2 = make_weight_norm_linear(k2, hidden, outputs)  # linear2 (output head)
    return [p0, p1, p2]


def _pad_linear(w, b, in_pad, out_pad, *, pad_bias_value=0.0):
    fi, fo = w.shape
    w_p = jnp.zeros((in_pad, out_pad), jnp.float32).at[:fi, :fo].set(w)
    b_p = jnp.full((1, out_pad), pad_bias_value, jnp.float32).at[:, :fo].set(b)
    return w_p, b_p


def pad_mlp_params(params):
    """Zero-pad all feature dims to multiples of 128; output-head padded bias
    lanes are -inf so log_softmax over real classes is unchanged."""
    (w0, b0), (w1, b1), (w2, b2) = params
    in_pad = _round_up(w0.shape[0], LANE)
    hid_pad = _round_up(w0.shape[1], LANE)
    out_pad = _round_up(w2.shape[1], LANE)
    p0 = _pad_linear(w0, b0, in_pad, hid_pad, pad_bias_value=0.0)
    p1 = _pad_linear(w1, b1, hid_pad, hid_pad, pad_bias_value=0.0)
    p2 = _pad_linear(w2, b2, hid_pad, out_pad, pad_bias_value=-jnp.inf)
    return [p0, p1, p2]


# Pure-JAX reference for sanity checking (unpadded math).
def mlp_forward_ref(x_flat, params):
    h = x_flat
    for i, (w, b) in enumerate(params):
        h = h @ w + b
        if i < len(params) - 1:
            h = jnp.where(h >= 0, h, NEG_SLOPE * h)
    return jax.nn.log_softmax(h, axis=-1)


if __name__ == "__main__":
    # Shapes consistent with the module: x of shape [2, 4, 16],
    # inputs = 4*16 = 64 (x.view(-1, inputs) -> [2, 64]), hidden=32,
    # outputs=16, layer=2 hidden layers.
    inputs, hidden, outputs, layer = 64, 32, 16, 2

    key = jax.random.PRNGKey(0)
    kx, kp = jax.random.split(key)
    x = jax.random.normal(kx, (2, 4, 16), dtype=jnp.float32)

    params = build_mlp_params(kp, inputs, hidden, outputs, layer=layer)
    padded_params = pad_mlp_params(params)

    x_flat = x.reshape(-1, inputs)  # == x.view(-1, self.inputs)

    out = mlp_forward_pallas(x_flat, padded_params, outputs)
    out = jax.block_until_ready(out)

    ref = mlp_forward_ref(x_flat, params)
    assert out.shape == (x_flat.shape[0], outputs)
    assert bool(jnp.all(jnp.isfinite(out))), "non-finite output"
    assert jnp.allclose(out, ref, atol=2e-4, rtol=2e-4), "mismatch vs reference"
    # log_softmax rows must sum to ~1 in prob space
    assert jnp.allclose(jnp.sum(jnp.exp(out), axis=-1), 1.0, atol=1e-4)

    print("KERNEL_OK")
</pallas_src>

<mosaic_0001>
module attributes {stable_mosaic.version = 11 : i64} {
  func.func @_mlp_kernel(%arg0: i32, %arg1: memref<128x128xf32, #tpu.memory_space<vmem>>, %arg2: memref<128x128xf32, #tpu.memory_space<vmem>>, %arg3: memref<1x128xf32, #tpu.memory_space<vmem>>, %arg4: memref<128x128xf32, #tpu.memory_space<vmem>>, %arg5: memref<1x128xf32, #tpu.memory_space<vmem>>, %arg6: memref<128x128xf32, #tpu.memory_space<vmem>>, %arg7: memref<1x128xf32, #tpu.memory_space<vmem>>, %arg8: memref<128x128xf32, #tpu.memory_space<vmem>>) attributes {dimension_semantics = [#tpu.dimension_semantics<parallel>], iteration_bounds = array<i64: 1>, scalar_prefetch = 0 : i64, scratch_operands = 0 : i64, tpu.core_type = #tpu.core_type<tc>, window_params = [{transform_indices = @transform_0, window_bounds = array<i64: 128, 128>}, {pipeline_mode = #tpu.pipeline_mode<synchronous>, transform_indices = @transform_1, window_bounds = array<i64: 128, 128>}, {pipeline_mode = #tpu.pipeline_mode<synchronous>, transform_indices = @transform_2, window_bounds = array<i64: 1, 128>}, {pipeline_mode = #tpu.pipeline_mode<synchronous>, transform_indices = @transform_3, window_bounds = array<i64: 128, 128>}, {pipeline_mode = #tpu.pipeline_mode<synchronous>, transform_indices = @transform_4, window_bounds = array<i64: 1, 128>}, {pipeline_mode = #tpu.pipeline_mode<synchronous>, transform_indices = @transform_5, window_bounds = array<i64: 128, 128>}, {pipeline_mode = #tpu.pipeline_mode<synchronous>, transform_indices = @transform_6, window_bounds = array<i64: 1, 128>}, {transform_indices = @transform_7, window_bounds = array<i64: 128, 128>}]} {
    %c0 = arith.constant 0 : index
    %c0_0 = arith.constant 0 : index
    %0 = vector.load %arg1[%c0, %c0_0] : memref<128x128xf32, #tpu.memory_space<vmem>>, vector<128x128xf32>
    %c0_1 = arith.constant 0 : index
    %c0_2 = arith.constant 0 : index
    %1 = vector.load %arg2[%c0_1, %c0_2] : memref<128x128xf32, #tpu.memory_space<vmem>>, vector<128x128xf32>
    %cst = arith.constant dense<0.000000e+00> : vector<128x128xf32>
    %2 = tpu.matmul %0, %1, %cst {dimension_numbers = #tpu.dot_dimension_numbers<[1], [0], [0], [1], [0, 0, 1, 1], [], []>} : vector<128x128xf32>, vector<128x128xf32>, vector<128x128xf32> -> vector<128x128xf32>
    %c0_3 = arith.constant 0 : index
    %c0_4 = arith.constant 0 : index
    %3 = vector.load %arg3[%c0_3, %c0_4] : memref<1x128xf32, #tpu.memory_space<vmem>>, vector<1x128xf32>
    %4 = vector.broadcast %3 : vector<1x128xf32> to vector<128x128xf32>
    %5 = arith.addf %2, %4 : vector<128x128xf32>
    %cst_5 = arith.constant 0.000000e+00 : f32
    %6 = vector.broadcast %cst_5 : f32 to vector<128x128xf32>
    %7 = arith.cmpf oge, %5, %6 : vector<128x128xf32>
    %cst_6 = arith.constant 0.00999999977 : f32
    %8 = vector.broadcast %cst_6 : f32 to vector<128x128xf32>
    %9 = arith.mulf %8, %5 : vector<128x128xf32>
    %10 = arith.select %7, %5, %9 : vector<128x128xi1>, vector<128x128xf32>
    %c0_7 = arith.constant 0 : index
    %c0_8 = arith.constant 0 : index
    %11 = vector.load %arg4[%c0_7, %c0_8] : memref<128x128xf32, #tpu.memory_space<vmem>>, vector<128x128xf32>
    %cst_9 = arith.constant dense<0.000000e+00> : vector<128x128xf32>
    %12 = tpu.matmul %10, %11, %cst_9 {dimension_numbers = #tpu.dot_dimension_numbers<[1], [0], [0], [1], [0, 0, 1, 1], [], []>} : vector<128x128xf32>, vector<128x128xf32>, vector<128x128xf32> -> vector<128x128xf32>
    %c0_10 = arith.constant 0 : index
    %c0_11 = arith.constant 0 : index
    %13 = vector.load %arg5[%c0_10, %c0_11] : memref<1x128xf32, #tpu.memory_space<vmem>>, vector<1x128xf32>
    %14 = vector.broadcast %13 : vector<1x128xf32> to vector<128x128xf32>
    %15 = arith.addf %12, %14 : vector<128x128xf32>
    %cst_12 = arith.constant 0.000000e+00 : f32
    %16 = vector.broadcast %cst_12 : f32 to vector<128x128xf32>
    %17 = arith.cmpf oge, %15, %16 : vector<128x128xf32>
    %cst_13 = arith.constant 0.00999999977 : f32
    %18 = vector.broadcast %cst_13 : f32 to vector<128x128xf32>
    %19 = arith.mulf %18, %15 : vector<128x128xf32>
    %20 = arith.select %17, %15, %19 : vector<128x128xi1>, vector<128x128xf32>
    %c0_14 = arith.constant 0 : index
    %c0_15 = arith.constant 0 : index
    %21 = vector.load %arg6[%c0_14, %c0_15] : memref<128x128xf32, #tpu.memory_space<vmem>>, vector<128x128xf32>
    %cst_16 = arith.constant dense<0.000000e+00> : vector<128x128xf32>
    %22 = tpu.matmul %20, %21, %cst_16 {dimension_numbers = #tpu.dot_dimension_numbers<[1], [0], [0], [1], [0, 0, 1, 1], [], []>} : vector<128x128xf32>, vector<128x128xf32>, vector<128x128xf32> -> vector<128x128xf32>
    %c0_17 = arith.constant 0 : index
    %c0_18 = arith.constant 0 : index
    %23 = vector.load %arg7[%c0_17, %c0_18] : memref<1x128xf32, #tpu.memory_space<vmem>>, vector<1x128xf32>
    %24 = vector.broadcast %23 : vector<1x128xf32> to vector<128x128xf32>
    %25 = arith.addf %22, %24 : vector<128x128xf32>
    %cst_19 = arith.constant dense<0xFF800000> : vector<128xf32>
    %26 = vector.multi_reduction <maximumf>, %25, %cst_19 [1] : vector<128x128xf32> to vector<128xf32>
    %27 = vector.shape_cast %26 : vector<128xf32> to vector<128x1xf32>
    %28 = vector.broadcast %27 : vector<128x1xf32> to vector<128x128xf32>
    %29 = arith.subf %25, %28 : vector<128x128xf32>
    %30 = math.exp %29 : vector<128x128xf32>
    %cst_20 = arith.constant dense<0.000000e+00> : vector<128xf32>
    %31 = vector.multi_reduction <add>, %30, %cst_20 [1] : vector<128x128xf32> to vector<128xf32>
    %32 = vector.shape_cast %31 : vector<128xf32> to vector<128x1xf32>
    %33 = math.log %32 : vector<128x1xf32>
    %34 = vector.broadcast %33 : vector<128x1xf32> to vector<128x128xf32>
    %35 = arith.subf %29, %34 : vector<128x128xf32>
    %c0_21 = arith.constant 0 : index
    %c0_22 = arith.constant 0 : index
    %36 = vector.load %arg8[%c0_21, %c0_22] : memref<128x128xf32, #tpu.memory_space<vmem>>, vector<128x128xf32>
    tpu.vector_store %arg8[%c0_21, %c0_22], %35 {strides = array<i32>} : memref<128x128xf32, #tpu.memory_space<vmem>>, vector<128x128xf32>,
    return
  }
  func.func @transform_0(%arg0: i32) -> (i32, i32) {
    %c0_i32 = arith.constant 0 : i32
    %c0_i32_0 = arith.constant 0 : i32
    return %arg0, %c0_i32 : i32, i32
  }
  func.func @transform_1(%arg0: i32) -> (i32, i32) {
    %c0_i32 = arith.constant 0 : i32
    %c0_i32_0 = arith.constant 0 : i32
    %c0_i32_1 = arith.constant 0 : i32
    return %c0_i32, %c0_i32_0 : i32, i32
  }
  func.func @transform_2(%arg0: i32) -> (i32, i32) {
    %c0_i32 = arith.constant 0 : i32
    %c0_i32_0 = arith.constant 0 : i32
    %c0_i32_1 = arith.constant 0 : i32
    return %c0_i32, %c0_i32_0 : i32, i32
  }
  func.func @transform_3(%arg0: i32) -> (i32, i32) {
    %c0_i32 = arith.constant 0 : i32
    %c0_i32_0 = arith.constant 0 : i32
    %c0_i32_1 = arith.constant 0 : i32
    return %c0_i32, %c0_i32_0 : i32, i32
  }
  func.func @transform_4(%arg0: i32) -> (i32, i32) {
    %c0_i32 = arith.constant 0 : i32
    %c0_i32_0 = arith.constant 0 : i32
    %c0_i32_1 = arith.constant 0 : i32
    return %c0_i32, %c0_i32_0 : i32, i32
  }
  func.func @transform_5(%arg0: i32) -> (i32, i32) {
    %c0_i32 = arith.constant 0 : i32
    %c0_i32_0 = arith.constant 0 : i32
    %c0_i32_1 = arith.constant 0 : i32
    return %c0_i32, %c0_i32_0 : i32, i32
  }
  func.func @transform_6(%arg0: i32) -> (i32, i32) {
    %c0_i32 = arith.constant 0 : i32
    %c0_i32_0 = arith.constant 0 : i32
    %c0_i32_1 = arith.constant 0 : i32
    return %c0_i32, %c0_i32_0 : i32, i32
  }
  func.func @transform_7(%arg0: i32) -> (i32, i32) {
    %c0_i32 = arith.constant 0 : i32
    %c0_i32_0 = arith.constant 0 : i32
    return %arg0, %c0_i32 : i32, i32
  }
}

</mosaic_0001>

<llo_original>
// kernel: tpu_custom_call.1
$region0: #{tpu_custom_call.1}
  #allocation0 [shape = 'u32[]', space=smem, size = 0x4, offset = 0x4, fixed_abs, tag = 'smem constant byte address 0x4 - core index']
  #allocation1 [shape = 'u32[144,128]{1,0:T(1,128)}', space=vmem, size = 0x12000, scoped, tag = 'internal scratch']
  %s0 = inlined_call_operand.hbm [shape: f32[128,128], index: 0, kind: input, shape index: {}]
  %s1 = inlined_call_operand.hbm [shape: f32[128,128], index: 1, kind: input, shape index: {}]
  %s2 = inlined_call_operand.vmem [shape: f32[1,128], index: 2, kind: input, shape index: {}]
  %s3 = inlined_call_operand.hbm [shape: f32[128,128], index: 3, kind: input, shape index: {}]
  %s4 = inlined_call_operand.vmem [shape: f32[1,128], index: 4, kind: input, shape index: {}]
  %s5 = inlined_call_operand.hbm [shape: f32[128,128], index: 5, kind: input, shape index: {}]
  %s6 = inlined_call_operand.vmem [shape: f32[1,128], index: 6, kind: input, shape index: {}]
  %s7 = inlined_call_operand.hbm [shape: f32[128,128], index: 7, kind: output, shape index: {}]
  %s8 = sld [smem:[#allocation0]]
  $region54: #{tpu_custom_call.1} parent=0
    _
  %s10 = ssub.s32 1, %s8
  %s11 = scalar_select 0, %s10, %s8
  $region1: #{tpu_custom_call.1} parent=0
    #allocation2 [shape = 'u8[65536]{0}', space=vmem, size = 0x10000, scoped, tag = 'input window, operand 0, single buffered']
    #allocation3 [shape = 's32[1]{0}', space=sflag, size = 0x4, scoped, tag = 'scoped memory for tpu_custom_call.1']
    #allocation4 [shape = 's32[1]{0}', space=sflag, size = 0x4, scoped, tag = 'scoped memory for tpu_custom_call.1']
    #allocation5 [shape = 'u8[65536]{0}', space=vmem, size = 0x10000, scoped, tag = 'input window, operand 1, single buffered']
    #allocation6 [shape = 's32[1]{0}', space=sflag, size = 0x4, scoped, tag = 'scoped memory for tpu_custom_call.1']
    #allocation7 [shape = 'u8[65536]{0}', space=vmem, size = 0x10000, scoped, tag = 'input window, operand 3, single buffered']
    #allocation8 [shape = 'u8[65536]{0}', space=vmem, size = 0x10000, scoped, tag = 'input window, operand 5, single buffered']
    #allocation9 [shape = 's32[1]{0}', space=sflag, size = 0x4, scoped, tag = 'scoped memory for tpu_custom_call.1']
    #allocation10 [shape = 'u8[65536]{0}', space=vmem, size = 0x10000, scoped, tag = 'output window, operand 0, single buffered']
    %12 = vsyncpa [#allocation3], 0
    %13 = vsyncpa [#allocation6], 0
    %14 = vsyncpa [#allocation9], 0
    %15 = vsyncpa [#allocation4], 0
    // Predicated region
    $region2: #{tpu_custom_call.1} parent=1 // pred_check
      _
    $region3: #{tpu_custom_call.1} parent=1 // pred_check_branch
      %17 = sbr.rel (0) target = $region5
    $region4: #{tpu_custom_call.1} parent=1 // pred_region
      %s19 = ssub.s32 2048, 2048
      %20 = vsyncadd [#allocation3], %s19
      %s21 = sshll.u32 [#allocation2], 4
      %s22 = int_to_ptr.vmem [resolvable:$true] %s21
      %27 = dma.hbm_to_vmem [thread:$0]  %s0, 2048, %s22, [#allocation3], 128, 128, 8
    $region5: #{tpu_custom_call.1} parent=1 // pred_fallthru
      _
    // Predicated region
    $region6: #{tpu_custom_call.1} parent=1 // pred_check
      _
    $region7: #{tpu_custom_call.1} parent=1 // pred_check_branch
      %29 = sbr.rel (0) target = $region9
    $region8: #{tpu_custom_call.1} parent=1 // pred_region
      %s31 = ssub.s32 2048, 2048
      %32 = vsyncadd [#allocation6], %s31
      %s33 = sshll.u32 [#allocation5], 4
      %s34 = int_to_ptr.vmem [resolvable:$true] %s33
      %39 = dma.hbm_to_vmem [thread:$0]  %s1, 2048, %s34, [#allocation6], 128, 128, 8
    $region9: #{tpu_custom_call.1} parent=1 // pred_fallthru
      _
    // Predicated region
    $region10: #{tpu_custom_call.1} parent=1 // pred_check
      _
    $region11: #{tpu_custom_call.1} parent=1 // pred_check_branch
      %41 = sbr.rel (0) target = $region13
    $region12: #{tpu_custom_call.1} parent=1 // pred_region
      _
    $region13: #{tpu_custom_call.1} parent=1 // pred_fallthru
      _
    // Predicated region
    $region14: #{tpu_custom_call.1} parent=1 // pred_check
      _
    $region15: #{tpu_custom_call.1} parent=1 // pred_check_branch
      %43 = sbr.rel (0) target = $region17
    $region16: #{tpu_custom_call.1} parent=1 // pred_region
      %s45 = ssub.s32 2048, 2048
      %46 = vsyncadd [#allocation6], %s45
      %s47 = sshll.u32 [#allocation7], 4
      %s48 = int_to_ptr.vmem [resolvable:$true] %s47
      %53 = dma.hbm_to_vmem [thread:$0]  %s3, 2048, %s48, [#allocation6], 128, 128, 8
    $region17: #{tpu_custom_call.1} parent=1 // pred_fallthru
      _
    // Predicated region
    $region18: #{tpu_custom_call.1} parent=1 // pred_check
      _
    $region19: #{tpu_custom_call.1} parent=1 // pred_check_branch
      %55 = sbr.rel (0) target = $region21
    $region20: #{tpu_custom_call.1} parent=1 // pred_region
      _
    $region21: #{tpu_custom_call.1} parent=1 // pred_fallthru
      _
    // Predicated region
    $region22: #{tpu_custom_call.1} parent=1 // pred_check
      _
    $region23: #{tpu_custom_call.1} parent=1 // pred_check_branch
      %57 = sbr.rel (0) target = $region25
    $region24: #{tpu_custom_call.1} parent=1 // pred_region
      %s59 = ssub.s32 2048, 2048
      %60 = vsyncadd [#allocation9], %s59
      %s61 = sshll.u32 [#allocation8], 4
      %s62 = int_to_ptr.vmem [resolvable:$true] %s61
      %67 = dma.hbm_to_vmem [thread:$0]  %s5, 2048, %s62, [#allocation9], 128, 128, 8
    $region25: #{tpu_custom_call.1} parent=1 // pred_fallthru
      _
    // Predicated region
    $region26: #{tpu_custom_call.1} parent=1 // pred_check
      _
    $region27: #{tpu_custom_call.1} parent=1 // pred_check_branch
      %69 = sbr.rel (0) target = $region29
    $region28: #{tpu_custom_call.1} parent=1 // pred_region
      _
    $region29: #{tpu_custom_call.1} parent=1 // pred_fallthru
      _
    // Predicated region
    $region30: #{tpu_custom_call.1} parent=1 // pred_check
      _
    $region31: #{tpu_custom_call.1} parent=1 // pred_check_branch
      %71 = sbr.rel (0) target = $region33
    $region32: #{tpu_custom_call.1} parent=1 // pred_region
      %72 = dma.done [#allocation3], 2048
    $region33: #{tpu_custom_call.1} parent=1 // pred_fallthru
      _
    // Predicated region
    $region34: #{tpu_custom_call.1} parent=1 // pred_check
      _
    $region35: #{tpu_custom_call.1} parent=1 // pred_check_branch
      %74 = sbr.rel (0) target = $region37
    $region36: #{tpu_custom_call.1} parent=1 // pred_region
      %75 = dma.done [#allocation6], 2048
    $region37: #{tpu_custom_call.1} parent=1 // pred_fallthru
      _
    // Predicated region
    $region38: #{tpu_custom_call.1} parent=1 // pred_check
      _
    $region39: #{tpu_custom_call.1} parent=1 // pred_check_branch
      %77 = sbr.rel (0) target = $region41
    $region40: #{tpu_custom_call.1} parent=1 // pred_region
      %78 = dma.done [#allocation6], 2048
    $region41: #{tpu_custom_call.1} parent=1 // pred_fallthru
      _
    // Predicated region
    $region42: #{tpu_custom_call.1} parent=1 // pred_check
      _
    $region43: #{tpu_custom_call.1} parent=1 // pred_check_branch
      %80 = sbr.rel (0) target = $region45
    $region44: #{tpu_custom_call.1} parent=1 // pred_region
      %81 = dma.done [#allocation9], 2048
    $region45: #{tpu_custom_call.1} parent=1 // pred_fallthru
      _
    %v82 = vld [vmem:[#allocation2] sm:$0xff]
    %v83 = vld [vmem:[#allocation2 + $0x8] sm:$0xff]
    %v84 = vld [vmem:[#allocation2 + $0x10] sm:$0xff]
    %v85 = vld [vmem:[#allocation2 + $0x18] sm:$0xff]
    %v86 = vld [vmem:[#allocation2 + $0x20] sm:$0xff]
    %v87 = vld [vmem:[#allocation2 + $0x28] sm:$0xff]
    %v88 = vld [vmem:[#allocation2 + $0x30] sm:$0xff]
    %v89 = vld [vmem:[#allocation2 + $0x38] sm:$0xff]
    %v90 = vld [vmem:[#allocation2 + $0x40] sm:$0xff]
    %v91 = vld [vmem:[#allocation2 + $0x48] sm:$0xff]
    %v92 = vld [vmem:[#allocation2 + $0x50] sm:$0xff]
    %v93 = vld [vmem:[#allocation2 + $0x58] sm:$0xff]
    %v94 = vld [vmem:[#allocation2 + $0x60] sm:$0xff]
    %v95 = vld [vmem:[#allocation2 + $0x68] sm:$0xff]
    %v96 = vld [vmem:[#allocation2 + $0x70] sm:$0xff]
    %v97 = vld [vmem:[#allocation2 + $0x78] sm:$0xff]
    %v98 = vld [vmem:[#allocation5] sm:$0xff]
    %v99 = vld [vmem:[#allocation5 + $0x8] sm:$0xff]
    %v100 = vld [vmem:[#allocation5 + $0x10] sm:$0xff]
    %v101 = vld [vmem:[#allocation5 + $0x18] sm:$0xff]
    %v102 = vld [vmem:[#allocation5 + $0x20] sm:$0xff]
    %v103 = vld [vmem:[#allocation5 + $0x28] sm:$0xff]
    %v104 = vld [vmem:[#allocation5 + $0x30] sm:$0xff]
    %v105 = vld [vmem:[#allocation5 + $0x38] sm:$0xff]
    %v106 = vld [vmem:[#allocation5 + $0x40] sm:$0xff]
    %v107 = vld [vmem:[#allocation5 + $0x48] sm:$0xff]
    %v108 = vld [vmem:[#allocation5 + $0x50] sm:$0xff]
    %v109 = vld [vmem:[#allocation5 + $0x58] sm:$0xff]
    %v110 = vld [vmem:[#allocation5 + $0x60] sm:$0xff]
    %v111 = vld [vmem:[#allocation5 + $0x68] sm:$0xff]
    %v112 = vld [vmem:[#allocation5 + $0x70] sm:$0xff]
    %v113 = vld [vmem:[#allocation5 + $0x78] sm:$0xff]
    %v114 = vld [vmem:[%s2] sm:$0x1]
    %v116 = vlaneseq
    %v117 = vshrl.u32 %v116, 7
    %v118 = vsub.s32 0, %v117
    %v119 = vrot.slane %v114, %v118
    %121 = vmatprep.subr.mxu0 0.0
    %122 = vmatpush1.msra.mxu0 %v113
    %123 = vmatprep.subr.mxu0 0.0
    %124 = vmatpush1.msra.mxu0 %v112
    %125 = vmatprep.subr.mxu0 0.0
    %126 = vmatpush1.msra.mxu0 %v111
    %127 = vmatprep.subr.mxu0 0.0
    %128 = vmatpush1.msra.mxu0 %v110
    %129 = vmatprep.subr.mxu0 0.0
    %130 = vmatpush1.msra.mxu0 %v109
    %131 = vmatprep.subr.mxu0 0.0
    %132 = vmatpush1.msra.mxu0 %v108
    %133 = vmatprep.subr.mxu0 0.0
    %134 = vmatpush1.msra.mxu0 %v107
    %135 = vmatprep.subr.mxu0 0.0
    %136 = vmatpush1.msra.mxu0 %v106
    %137 = vmatprep.subr.mxu0 0.0
    %138 = vmatpush1.msra.mxu0 %v105
    %139 = vmatprep.subr.mxu0 0.0
    %140 = vmatpush1.msra.mxu0 %v104
    %141 = vmatprep.subr.mxu0 0.0
    %142 = vmatpush1.msra.mxu0 %v103
    %143 = vmatprep.subr.mxu0 0.0
    %144 = vmatpush1.msra.mxu0 %v102
    %145 = vmatprep.subr.mxu0 0.0
    %146 = vmatpush1.msra.mxu0 %v101
    %147 = vmatprep.subr.mxu0 0.0
    %148 = vmatpush1.msra.mxu0 %v100
    %149 = vmatprep.subr.mxu0 0.0
    %150 = vmatpush1.msra.mxu0 %v99
    %151 = vmatprep.subr.mxu0 0.0
    %152 = vmatpush1.msra.mxu0 %v98
    %153 = vmatprep.subr.mxu0 0.0
    %154 = vmatpush2.msra.mxu0 0.0
    %155 = vmatprep.subr.mxu0 0.0
    %156 = vmatpush2.msra.mxu0 0.0
    %157 = vmatprep.subr.mxu0 0.0
    %158 = vmatpush2.msra.mxu0 0.0
    %159 = vmatprep.subr.mxu0 0.0
    %160 = vmatpush2.msra.mxu0 0.0
    %161 = vmatprep.subr.mxu0 0.0
    %162 = vmatpush2.msra.mxu0 0.0
    %163 = vmatprep.subr.mxu0 0.0
    %164 = vmatpush2.msra.mxu0 0.0
    %165 = vmatprep.subr.mxu0 0.0
    %166 = vmatpush2.msra.mxu0 0.0
    %167 = vmatprep.subr.mxu0 0.0
    %168 = vmatpush2.msra.mxu0 0.0
    %169 = vmatprep.subr.mxu0 0.0
    %170 = vmatpush2.msra.mxu0 0.0
    %171 = vmatprep.subr.mxu0 0.0
    %172 = vmatpush2.msra.mxu0 0.0
    %173 = vmatprep.subr.mxu0 0.0
    %174 = vmatpush2.msra.mxu0 0.0
    %175 = vmatprep.subr.mxu0 0.0
    %176 = vmatpush2.msra.mxu0 0.0
    %177 = vmatprep.subr.mxu0 0.0
    %178 = vmatpush2.msra.mxu0 0.0
    %179 = vmatprep.subr.mxu0 0.0
    %180 = vmatpush2.msra.mxu0 0.0
    %181 = vmatprep.subr.mxu0 0.0
    %182 = vmatpush2.msra.mxu0 0.0
    %183 = vmatprep.subr.mxu0 0.0
    %184 = vmatpush2.msra.mxu0 0.0
    %185 = vmatprep.mubr.f32.mxu0 0.0
    %186 = vmatmul.mubr.f32.gmra.mxu0 %v82
    %v187 = vpop.f32.mrf.mxu0
    %v188 = vadd.f32 %v119, %v187
    %v189 = vpop.f32.mrf.mxu0
    %190 = vmatprep.mubr.f32.mxu0 0.0
    %191 = vmatmul.mubr.f32.gmra.mxu0 %v83
    %v192 = vpop.f32.mrf.mxu0
    %v193 = vadd.f32 %v119, %v192
    %v194 = vpop.f32.mrf.mxu0
    %195 = vmatprep.mubr.f32.mxu0 0.0
    %196 = vmatmul.mubr.f32.gmra.mxu0 %v84
    %v197 = vpop.f32.mrf.mxu0
    %v198 = vadd.f32 %v119, %v197
    %v199 = vpop.f32.mrf.mxu0
    %200 = vmatprep.mubr.f32.mxu0 0.0
    %201 = vmatmul.mubr.f32.gmra.mxu0 %v85
    %v202 = vpop.f32.mrf.mxu0
    %v203 = vadd.f32 %v119, %v202
    %v204 = vpop.f32.mrf.mxu0
    %205 = vmatprep.mubr.f32.mxu0 0.0
    %206 = vmatmul.mubr.f32.gmra.mxu0 %v86
    %v207 = vpop.f32.mrf.mxu0
    %v208 = vadd.f32 %v119, %v207
    %v209 = vpop.f32.mrf.mxu0
    %210 = vmatprep.mubr.f32.mxu0 0.0
    %211 = vmatmul.mubr.f32.gmra.mxu0 %v87
    %v212 = vpop.f32.mrf.mxu0
    %v213 = vadd.f32 %v119, %v212
    %v214 = vpop.f32.mrf.mxu0
    %215 = vmatprep.mubr.f32.mxu0 0.0
    %216 = vmatmul.mubr.f32.gmra.mxu0 %v88
    %v217 = vpop.f32.mrf.mxu0
    %v218 = vadd.f32 %v119, %v217
    %v219 = vpop.f32.mrf.mxu0
    %220 = vmatprep.mubr.f32.mxu0 0.0
    %221 = vmatmul.mubr.f32.gmra.mxu0 %v89
    %v222 = vpop.f32.mrf.mxu0
    %v223 = vadd.f32 %v119, %v222
    %v224 = vpop.f32.mrf.mxu0
    %225 = vmatprep.mubr.f32.mxu0 0.0
    %226 = vmatmul.mubr.f32.gmra.mxu0 %v90
    %v227 = vpop.f32.mrf.mxu0
    %v228 = vadd.f32 %v119, %v227
    %v229 = vpop.f32.mrf.mxu0
    %230 = vmatprep.mubr.f32.mxu0 0.0
    %231 = vmatmul.mubr.f32.gmra.mxu0 %v91
    %v232 = vpop.f32.mrf.mxu0
    %v233 = vadd.f32 %v119, %v232
    %v234 = vpop.f32.mrf.mxu0
    %235 = vmatprep.mubr.f32.mxu0 0.0
    %236 = vmatmul.mubr.f32.gmra.mxu0 %v92
    %v237 = vpop.f32.mrf.mxu0
    %v238 = vadd.f32 %v119, %v237
    %v239 = vpop.f32.mrf.mxu0
    %240 = vmatprep.mubr.f32.mxu0 0.0
    %241 = vmatmul.mubr.f32.gmra.mxu0 %v93
    %v242 = vpop.f32.mrf.mxu0
    %v243 = vadd.f32 %v119, %v242
    %v244 = vpop.f32.mrf.mxu0
    %245 = vmatprep.mubr.f32.mxu0 0.0
    %246 = vmatmul.mubr.f32.gmra.mxu0 %v94
    %v247 = vpop.f32.mrf.mxu0
    %v248 = vadd.f32 %v119, %v247
    %v249 = vpop.f32.mrf.mxu0
    %250 = vmatprep.mubr.f32.mxu0 0.0
    %251 = vmatmul.mubr.f32.gmra.mxu0 %v95
    %v252 = vpop.f32.mrf.mxu0
    %v253 = vadd.f32 %v119, %v252
    %v254 = vpop.f32.mrf.mxu0
    %255 = vmatprep.mubr.f32.mxu0 0.0
    %256 = vmatmul.mubr.f32.gmra.mxu0 %v96
    %v257 = vpop.f32.mrf.mxu0
    %v258 = vadd.f32 %v119, %v257
    %v259 = vpop.f32.mrf.mxu0
    %260 = vmatprep.mubr.f32.mxu0 0.0
    %261 = vmatmul.mubr.f32.gmra.mxu0 %v97
    %v262 = vpop.f32.mrf.mxu0
    %v263 = vadd.f32 %v119, %v262
    %v264 = vpop.f32.mrf.mxu0
    %265 = vdwg.mxu0
    %vm266 = vcmp.ge.f32.partialorder %v188, 0.0
    %vm267 = vcmp.ge.f32.partialorder %v193, 0.0
    %vm268 = vcmp.ge.f32.partialorder %v198, 0.0
    %vm269 = vcmp.ge.f32.partialorder %v203, 0.0
    %vm270 = vcmp.ge.f32.partialorder %v208, 0.0
    %vm271 = vcmp.ge.f32.partialorder %v213, 0.0
    %vm272 = vcmp.ge.f32.partialorder %v218, 0.0
    %vm273 = vcmp.ge.f32.partialorder %v223, 0.0
    %vm274 = vcmp.ge.f32.partialorder %v228, 0.0
    %vm275 = vcmp.ge.f32.partialorder %v233, 0.0
    %vm276 = vcmp.ge.f32.partialorder %v238, 0.0
    %vm277 = vcmp.ge.f32.partialorder %v243, 0.0
    %vm278 = vcmp.ge.f32.partialorder %v248, 0.0
    %vm279 = vcmp.ge.f32.partialorder %v253, 0.0
    %vm280 = vcmp.ge.f32.partialorder %v258, 0.0
    %vm281 = vcmp.ge.f32.partialorder %v263, 0.0
    %v282 = vmul.f32 %v188, 0.01
    %v283 = vmul.f32 %v193, 0.01
    %v284 = vmul.f32 %v198, 0.01
    %v285 = vmul.f32 %v203, 0.01
    %v286 = vmul.f32 %v208, 0.01
    %v287 = vmul.f32 %v213, 0.01
    %v288 = vmul.f32 %v218, 0.01
    %v289 = vmul.f32 %v223, 0.01
    %v290 = vmul.f32 %v228, 0.01
    %v291 = vmul.f32 %v233, 0.01
    %v292 = vmul.f32 %v238, 0.01
    %v293 = vmul.f32 %v243, 0.01
    %v294 = vmul.f32 %v248, 0.01
    %v295 = vmul.f32 %v253, 0.01
    %v296 = vmul.f32 %v258, 0.01
    %v297 = vmul.f32 %v263, 0.01
    %v298 = vsel %vm266, %v188, %v282
    %v299 = vsel %vm267, %v193, %v283
    %v300 = vsel %vm268, %v198, %v284
    %v301 = vsel %vm269, %v203, %v285
    %v302 = vsel %vm270, %v208, %v286
    %v303 = vsel %vm271, %v213, %v287
    %v304 = vsel %vm272, %v218, %v288
    %v305 = vsel %vm273, %v223, %v289
    %v306 = vsel %vm274, %v228, %v290
    %v307 = vsel %vm275, %v233, %v291
    %v308 = vsel %vm276, %v238, %v292
    %v309 = vsel %vm277, %v243, %v293
    %v310 = vsel %vm278, %v248, %v294
    %v311 = vsel %vm279, %v253, %v295
    %v312 = vsel %vm280, %v258, %v296
    %v313 = vsel %vm281, %v263, %v297
    %v314 = vld [vmem:[#allocation7] sm:$0xff]
    %v315 = vld [vmem:[#allocation7 + $0x8] sm:$0xff]
    %v316 = vld [vmem:[#allocation7 + $0x10] sm:$0xff]
    %v317 = vld [vmem:[#allocation7 + $0x18] sm:$0xff]
    %v318 = vld [vmem:[#allocation7 + $0x20] sm:$0xff]
    %v319 = vld [vmem:[#allocation7 + $0x28] sm:$0xff]
    %v320 = vld [vmem:[#allocation7 + $0x30] sm:$0xff]
    %v321 = vld [vmem:[#allocation7 + $0x38] sm:$0xff]
    %v322 = vld [vmem:[#allocation7 + $0x40] sm:$0xff]
    %v323 = vld [vmem:[#allocation7 + $0x48] sm:$0xff]
    %v324 = vld [vmem:[#allocation7 + $0x50] sm:$0xff]
    %v325 = vld [vmem:[#allocation7 + $0x58] sm:$0xff]
    %v326 = vld [vmem:[#allocation7 + $0x60] sm:$0xff]
    %v327 = vld [vmem:[#allocation7 + $0x68] sm:$0xff]
    %v328 = vld [vmem:[#allocation7 + $0x70] sm:$0xff]
    %v329 = vld [vmem:[#allocation7 + $0x78] sm:$0xff]
    %v330 = vld [vmem:[%s4] sm:$0x1]
    %v332 = vlaneseq
    %v333 = vshrl.u32 %v332, 7
    %v334 = vsub.s32 0, %v333
    %v335 = vrot.slane %v330, %v334
    %337 = vmatprep.subr.mxu0 0.0
    %338 = vmatpush1.msra.mxu0 %v329
    %339 = vmatprep.subr.mxu0 0.0
    %340 = vmatpush1.msra.mxu0 %v328
    %341 = vmatprep.subr.mxu0 0.0
    %342 = vmatpush1.msra.mxu0 %v327
    %343 = vmatprep.subr.mxu0 0.0
    %344 = vmatpush1.msra.mxu0 %v326
    %345 = vmatprep.subr.mxu0 0.0
    %346 = vmatpush1.msra.mxu0 %v325
    %347 = vmatprep.subr.mxu0 0.0
    %348 = vmatpush1.msra.mxu0 %v324
    %349 = vmatprep.subr.mxu0 0.0
    %350 = vmatpush1.msra.mxu0 %v323
    %351 = vmatprep.subr.mxu0 0.0
    %352 = vmatpush1.msra.mxu0 %v322
    %353 = vmatprep.subr.mxu0 0.0
    %354 = vmatpush1.msra.mxu0 %v321
    %355 = vmatprep.subr.mxu0 0.0
    %356 = vmatpush1.msra.mxu0 %v320
    %357 = vmatprep.subr.mxu0 0.0
    %358 = vmatpush1.msra.mxu0 %v319
    %359 = vmatprep.subr.mxu0 0.0
    %360 = vmatpush1.msra.mxu0 %v318
    %361 = vmatprep.subr.mxu0 0.0
    %362 = vmatpush1.msra.mxu0 %v317
    %363 = vmatprep.subr.mxu0 0.0
    %364 = vmatpush1.msra.mxu0 %v316
    %365 = vmatprep.subr.mxu0 0.0
    %366 = vmatpush1.msra.mxu0 %v315
    %367 = vmatprep.subr.mxu0 0.0
    %368 = vmatpush1.msra.mxu0 %v314
    %369 = vmatprep.subr.mxu0 0.0
    %370 = vmatpush2.msra.mxu0 0.0
    %371 = vmatprep.subr.mxu0 0.0
    %372 = vmatpush2.msra.mxu0 0.0
    %373 = vmatprep.subr.mxu0 0.0
    %374 = vmatpush2.msra.mxu0 0.0
    %375 = vmatprep.subr.mxu0 0.0
    %376 = vmatpush2.msra.mxu0 0.0
    %377 = vmatprep.subr.mxu0 0.0
    %378 = vmatpush2.msra.mxu0 0.0
    %379 = vmatprep.subr.mxu0 0.0
    %380 = vmatpush2.msra.mxu0 0.0
    %381 = vmatprep.subr.mxu0 0.0
    %382 = vmatpush2.msra.mxu0 0.0
    %383 = vmatprep.subr.mxu0 0.0
    %384 = vmatpush2.msra.mxu0 0.0
    %385 = vmatprep.subr.mxu0 0.0
    %386 = vmatpush2.msra.mxu0 0.0
    %387 = vmatprep.subr.mxu0 0.0
    %388 = vmatpush2.msra.mxu0 0.0
    %389 = vmatprep.subr.mxu0 0.0
    %390 = vmatpush2.msra.mxu0 0.0
    %391 = vmatprep.subr.mxu0 0.0
    %392 = vmatpush2.msra.mxu0 0.0
    %393 = vmatprep.subr.mxu0 0.0
    %394 = vmatpush2.msra.mxu0 0.0
    %395 = vmatprep.subr.mxu0 0.0
    %396 = vmatpush2.msra.mxu0 0.0
    %397 = vmatprep.subr.mxu0 0.0
    %398 = vmatpush2.msra.mxu0 0.0
    %399 = vmatprep.subr.mxu0 0.0
    %400 = vmatpush2.msra.mxu0 0.0
    %401 = vmatprep.mubr.f32.mxu0 0.0
    %402 = vmatmul.mubr.f32.gmra.mxu0 %v298
    %v403 = vpop.f32.mrf.mxu0
    %v404 = vadd.f32 %v335, %v403
    %v405 = vpop.f32.mrf.mxu0
    %406 = vmatprep.mubr.f32.mxu0 0.0
    %407 = vmatmul.mubr.f32.gmra.mxu0 %v299
    %v408 = vpop.f32.mrf.mxu0
    %v409 = vadd.f32 %v335, %v408
    %v410 = vpop.f32.mrf.mxu0
    %411 = vmatprep.mubr.f32.mxu0 0.0
    %412 = vmatmul.mubr.f32.gmra.mxu0 %v300
    %v413 = vpop.f32.mrf.mxu0
    %v414 = vadd.f32 %v335, %v413
    %v415 = vpop.f32.mrf.mxu0
    %416 = vmatprep.mubr.f32.mxu0 0.0
    %417 = vmatmul.mubr.f32.gmra.mxu0 %v301
    %v418 = vpop.f32.mrf.mxu0
    %v419 = vadd.f32 %v335, %v418
    %v420 = vpop.f32.mrf.mxu0
    %421 = vmatprep.mubr.f32.mxu0 0.0
    %422 = vmatmul.mubr.f32.gmra.mxu0 %v302
    %v423 = vpop.f32.mrf.mxu0
    %v424 = vadd.f32 %v335, %v423
    %v425 = vpop.f32.mrf.mxu0
    %426 = vmatprep.mubr.f32.mxu0 0.0
    %427 = vmatmul.mubr.f32.gmra.mxu0 %v303
    %v428 = vpop.f32.mrf.mxu0
    %v429 = vadd.f32 %v335, %v428
    %v430 = vpop.f32.mrf.mxu0
    %431 = vmatprep.mubr.f32.mxu0 0.0
    %432 = vmatmul.mubr.f32.gmra.mxu0 %v304
    %v433 = vpop.f32.mrf.mxu0
    %v434 = vadd.f32 %v335, %v433
    %v435 = vpop.f32.mrf.mxu0
    %436 = vmatprep.mubr.f32.mxu0 0.0
    %437 = vmatmul.mubr.f32.gmra.mxu0 %v305
    %v438 = vpop.f32.mrf.mxu0
    %v439 = vadd.f32 %v335, %v438
    %v440 = vpop.f32.mrf.mxu0
    %441 = vmatprep.mubr.f32.mxu0 0.0
    %442 = vmatmul.mubr.f32.gmra.mxu0 %v306
    %v443 = vpop.f32.mrf.mxu0
    %v444 = vadd.f32 %v335, %v443
    %v445 = vpop.f32.mrf.mxu0
    %446 = vmatprep.mubr.f32.mxu0 0.0
    %447 = vmatmul.mubr.f32.gmra.mxu0 %v307
    %v448 = vpop.f32.mrf.mxu0
    %v449 = vadd.f32 %v335, %v448
    %v450 = vpop.f32.mrf.mxu0
    %451 = vmatprep.mubr.f32.mxu0 0.0
    %452 = vmatmul.mubr.f32.gmra.mxu0 %v308
    %v453 = vpop.f32.mrf.mxu0
    %v454 = vadd.f32 %v335, %v453
    %v455 = vpop.f32.mrf.mxu0
    %456 = vmatprep.mubr.f32.mxu0 0.0
    %457 = vmatmul.mubr.f32.gmra.mxu0 %v309
    %v458 = vpop.f32.mrf.mxu0
    %v459 = vadd.f32 %v335, %v458
    %v460 = vpop.f32.mrf.mxu0
    %461 = vmatprep.mubr.f32.mxu0 0.0
    %462 = vmatmul.mubr.f32.gmra.mxu0 %v310
    %v463 = vpop.f32.mrf.mxu0
    %v464 = vadd.f32 %v335, %v463
    %v465 = vpop.f32.mrf.mxu0
    %466 = vmatprep.mubr.f32.mxu0 0.0
    %467 = vmatmul.mubr.f32.gmra.mxu0 %v311
    %v468 = vpop.f32.mrf.mxu0
    %v469 = vadd.f32 %v335, %v468
    %v470 = vpop.f32.mrf.mxu0
    %471 = vmatprep.mubr.f32.mxu0 0.0
    %472 = vmatmul.mubr.f32.gmra.mxu0 %v312
    %v473 = vpop.f32.mrf.mxu0
    %v474 = vadd.f32 %v335, %v473
    %v475 = vpop.f32.mrf.mxu0
    %476 = vmatprep.mubr.f32.mxu0 0.0
    %477 = vmatmul.mubr.f32.gmra.mxu0 %v313
    %v478 = vpop.f32.mrf.mxu0
    %v479 = vadd.f32 %v335, %v478
    %v480 = vpop.f32.mrf.mxu0
    %481 = vdwg.mxu0
    %vm482 = vcmp.ge.f32.partialorder %v404, 0.0
    %vm483 = vcmp.ge.f32.partialorder %v409, 0.0
    %vm484 = vcmp.ge.f32.partialorder %v414, 0.0
    %vm485 = vcmp.ge.f32.partialorder %v419, 0.0
    %vm486 = vcmp.ge.f32.partialorder %v424, 0.0
    %vm487 = vcmp.ge.f32.partialorder %v429, 0.0
    %vm488 = vcmp.ge.f32.partialorder %v434, 0.0
    %vm489 = vcmp.ge.f32.partialorder %v439, 0.0
    %vm490 = vcmp.ge.f32.partialorder %v444, 0.0
    %vm491 = vcmp.ge.f32.partialorder %v449, 0.0
    %vm492 = vcmp.ge.f32.partialorder %v454, 0.0
    %vm493 = vcmp.ge.f32.partialorder %v459, 0.0
    %vm494 = vcmp.ge.f32.partialorder %v464, 0.0
    %vm495 = vcmp.ge.f32.partialorder %v469, 0.0
    %vm496 = vcmp.ge.f32.partialorder %v474, 0.0
    %vm497 = vcmp.ge.f32.partialorder %v479, 0.0
    %v498 = vmul.f32 %v404, 0.01
    %v499 = vmul.f32 %v409, 0.01
    %v500 = vmul.f32 %v414, 0.01
    %v501 = vmul.f32 %v419, 0.01
    %v502 = vmul.f32 %v424, 0.01
    %v503 = vmul.f32 %v429, 0.01
    %v504 = vmul.f32 %v434, 0.01
    %v505 = vmul.f32 %v439, 0.01
    %v506 = vmul.f32 %v444, 0.01
    %v507 = vmul.f32 %v449, 0.01
    %v508 = vmul.f32 %v454, 0.01
    %v509 = vmul.f32 %v459, 0.01
    %v510 = vmul.f32 %v464, 0.01
    %v511 = vmul.f32 %v469, 0.01
    %v512 = vmul.f32 %v474, 0.01
    %v513 = vmul.f32 %v479, 0.01
    %v514 = vsel %vm482, %v404, %v498
    %v515 = vsel %vm483, %v409, %v499
    %v516 = vsel %vm484, %v414, %v500
    %v517 = vsel %vm485, %v419, %v501
    %v518 = vsel %vm486, %v424, %v502
    %v519 = vsel %vm487, %v429, %v503
    %v520 = vsel %vm488, %v434, %v504
    %v521 = vsel %vm489, %v439, %v505
    %v522 = vsel %vm490, %v444, %v506
    %v523 = vsel %vm491, %v449, %v507
    %v524 = vsel %vm492, %v454, %v508
    %v525 = vsel %vm493, %v459, %v509
    %v526 = vsel %vm494, %v464, %v510
    %v527 = vsel %vm495, %v469, %v511
    %v528 = vsel %vm496, %v474, %v512
    %v529 = vsel %vm497, %v479, %v513
    %v530 = vld [vmem:[#allocation8] sm:$0xff]
    %v531 = vld [vmem:[#allocation8 + $0x8] sm:$0xff]
    %v532 = vld [vmem:[#allocation8 + $0x10] sm:$0xff]
    %v533 = vld [vmem:[#allocation8 + $0x18] sm:$0xff]
    %v534 = vld [vmem:[#allocation8 + $0x20] sm:$0xff]
    %v535 = vld [vmem:[#allocation8 + $0x28] sm:$0xff]
    %v536 = vld [vmem:[#allocation8 + $0x30] sm:$0xff]
    %v537 = vld [vmem:[#allocation8 + $0x38] sm:$0xff]
    %v538 = vld [vmem:[#allocation8 + $0x40] sm:$0xff]
    %v539 = vld [vmem:[#allocation8 + $0x48] sm:$0xff]
    %v540 = vld [vmem:[#allocation8 + $0x50] sm:$0xff]
    %v541 = vld [vmem:[#allocation8 + $0x58] sm:$0xff]
    %v542 = vld [vmem:[#allocation8 + $0x60] sm:$0xff]
    %v543 = vld [vmem:[#allocation8 + $0x68] sm:$0xff]
    %v544 = vld [vmem:[#allocation8 + $0x70] sm:$0xff]
    %v545 = vld [vmem:[#allocation8 + $0x78] sm:$0xff]
    %v546 = vld [vmem:[%s6] sm:$0x1]
    %v548 = vlaneseq
    %v549 = vshrl.u32 %v548, 7
    %v550 = vsub.s32 0, %v549
    %v551 = vrot.slane %v546, %v550
    %553 = vmatprep.subr.mxu0 0.0
    %554 = vmatpush1.msra.mxu0 %v545
    %555 = vmatprep.subr.mxu0 0.0
    %556 = vmatpush1.msra.mxu0 %v544
    %557 = vmatprep.subr.mxu0 0.0
    %558 = vmatpush1.msra.mxu0 %v543
    %559 = vmatprep.subr.mxu0 0.0
    %560 = vmatpush1.msra.mxu0 %v542
    %561 = vmatprep.subr.mxu0 0.0
    %562 = vmatpush1.msra.mxu0 %v541
    %563 = vmatprep.subr.mxu0 0.0
    %564 = vmatpush1.msra.mxu0 %v540
    %565 = vmatprep.subr.mxu0 0.0
    %566 = vmatpush1.msra.mxu0 %v539
    %567 = vmatprep.subr.mxu0 0.0
    %568 = vmatpush1.msra.mxu0 %v538
    %569 = vmatprep.subr.mxu0 0.0
    %570 = vmatpush1.msra.mxu0 %v537
    %571 = vmatprep.subr.mxu0 0.0
    %572 = vmatpush1.msra.mxu0 %v536
    %573 = vmatprep.subr.mxu0 0.0
    %574 = vmatpush1.msra.mxu0 %v535
    %575 = vmatprep.subr.mxu0 0.0
    %576 = vmatpush1.msra.mxu0 %v534
    %577 = vmatprep.subr.mxu0 0.0
    %578 = vmatpush1.msra.mxu0 %v533
    %579 = vmatprep.subr.mxu0 0.0
    %580 = vmatpush1.msra.mxu0 %v532
    %581 = vmatprep.subr.mxu0 0.0
    %582 = vmatpush1.msra.mxu0 %v531
    %583 = vmatprep.subr.mxu0 0.0
    %584 = vmatpush1.msra.mxu0 %v530
    %585 = vmatprep.subr.mxu0 0.0
    %586 = vmatpush2.msra.mxu0 0.0
    %587 = vmatprep.subr.mxu0 0.0
    %588 = vmatpush2.msra.mxu0 0.0
    %589 = vmatprep.subr.mxu0 0.0
    %590 = vmatpush2.msra.mxu0 0.0
    %591 = vmatprep.subr.mxu0 0.0
    %592 = vmatpush2.msra.mxu0 0.0
    %593 = vmatprep.subr.mxu0 0.0
    %594 = vmatpush2.msra.mxu0 0.0
    %595 = vmatprep.subr.mxu0 0.0
    %596 = vmatpush2.msra.mxu0 0.0
    %597 = vmatprep.subr.mxu0 0.0
    %598 = vmatpush2.msra.mxu0 0.0
    %599 = vmatprep.subr.mxu0 0.0
    %600 = vmatpush2.msra.mxu0 0.0
    %601 = vmatprep.subr.mxu0 0.0
    %602 = vmatpush2.msra.mxu0 0.0
    %603 = vmatprep.subr.mxu0 0.0
    %604 = vmatpush2.msra.mxu0 0.0
    %605 = vmatprep.subr.mxu0 0.0
    %606 = vmatpush2.msra.mxu0 0.0
    %607 = vmatprep.subr.mxu0 0.0
    %608 = vmatpush2.msra.mxu0 0.0
    %609 = vmatprep.subr.mxu0 0.0
    %610 = vmatpush2.msra.mxu0 0.0
    %611 = vmatprep.subr.mxu0 0.0
    %612 = vmatpush2.msra.mxu0 0.0
    %613 = vmatprep.subr.mxu0 0.0
    %614 = vmatpush2.msra.mxu0 0.0
    %615 = vmatprep.subr.mxu0 0.0
    %616 = vmatpush2.msra.mxu0 0.0
    %617 = vmatprep.mubr.f32.mxu0 0.0
    %618 = vmatmul.mubr.f32.gmra.mxu0 %v514
    %v619 = vpop.f32.mrf.mxu0
    %v620 = vadd.f32 %v551, %v619
    %v621 = vpop.f32.mrf.mxu0
    %622 = vmatprep.mubr.f32.mxu0 0.0
    %623 = vmatmul.mubr.f32.gmra.mxu0 %v515
    %v624 = vpop.f32.mrf.mxu0
    %v625 = vadd.f32 %v551, %v624
    %v626 = vpop.f32.mrf.mxu0
    %627 = vmatprep.mubr.f32.mxu0 0.0
    %628 = vmatmul.mubr.f32.gmra.mxu0 %v516
    %v629 = vpop.f32.mrf.mxu0
    %v630 = vadd.f32 %v551, %v629
    %v631 = vpop.f32.mrf.mxu0
    %632 = vmatprep.mubr.f32.mxu0 0.0
    %633 = vmatmul.mubr.f32.gmra.mxu0 %v517
    %v634 = vpop.f32.mrf.mxu0
    %v635 = vadd.f32 %v551, %v634
    %v636 = vpop.f32.mrf.mxu0
    %637 = vmatprep.mubr.f32.mxu0 0.0
    %638 = vmatmul.mubr.f32.gmra.mxu0 %v518
    %v639 = vpop.f32.mrf.mxu0
    %v640 = vadd.f32 %v551, %v639
    %v641 = vpop.f32.mrf.mxu0
    %642 = vmatprep.mubr.f32.mxu0 0.0
    %643 = vmatmul.mubr.f32.gmra.mxu0 %v519
    %v644 = vpop.f32.mrf.mxu0
    %v645 = vadd.f32 %v551, %v644
    %v646 = vpop.f32.mrf.mxu0
    %647 = vmatprep.mubr.f32.mxu0 0.0
    %648 = vmatmul.mubr.f32.gmra.mxu0 %v520
    %v649 = vpop.f32.mrf.mxu0
    %v650 = vadd.f32 %v551, %v649
    %v651 = vpop.f32.mrf.mxu0
    %652 = vmatprep.mubr.f32.mxu0 0.0
    %653 = vmatmul.mubr.f32.gmra.mxu0 %v521
    %v654 = vpop.f32.mrf.mxu0
    %v655 = vadd.f32 %v551, %v654
    %v656 = vpop.f32.mrf.mxu0
    %657 = vmatprep.mubr.f32.mxu0 0.0
    %658 = vmatmul.mubr.f32.gmra.mxu0 %v522
    %v659 = vpop.f32.mrf.mxu0
    %v660 = vadd.f32 %v551, %v659
    %v661 = vpop.f32.mrf.mxu0
    %662 = vmatprep.mubr.f32.mxu0 0.0
    %663 = vmatmul.mubr.f32.gmra.mxu0 %v523
    %v664 = vpop.f32.mrf.mxu0
    %v665 = vadd.f32 %v551, %v664
    %v666 = vpop.f32.mrf.mxu0
    %667 = vmatprep.mubr.f32.mxu0 0.0
    %668 = vmatmul.mubr.f32.gmra.mxu0 %v524
    %v669 = vpop.f32.mrf.mxu0
    %v670 = vadd.f32 %v551, %v669
    %v671 = vpop.f32.mrf.mxu0
    %672 = vmatprep.mubr.f32.mxu0 0.0
    %673 = vmatmul.mubr.f32.gmra.mxu0 %v525
    %v674 = vpop.f32.mrf.mxu0
    %v675 = vadd.f32 %v551, %v674
    %v676 = vpop.f32.mrf.mxu0
    %677 = vmatprep.mubr.f32.mxu0 0.0
    %678 = vmatmul.mubr.f32.gmra.mxu0 %v526
    %v679 = vpop.f32.mrf.mxu0
    %v680 = vadd.f32 %v551, %v679
    %v681 = vpop.f32.mrf.mxu0
    %682 = vmatprep.mubr.f32.mxu0 0.0
    %683 = vmatmul.mubr.f32.gmra.mxu0 %v527
    %v684 = vpop.f32.mrf.mxu0
    %v685 = vadd.f32 %v551, %v684
    %v686 = vpop.f32.mrf.mxu0
    %687 = vmatprep.mubr.f32.mxu0 0.0
    %688 = vmatmul.mubr.f32.gmra.mxu0 %v528
    %v689 = vpop.f32.mrf.mxu0
    %v690 = vadd.f32 %v551, %v689
    %v691 = vpop.f32.mrf.mxu0
    %692 = vmatprep.mubr.f32.mxu0 0.0
    %693 = vmatmul.mubr.f32.gmra.mxu0 %v529
    %v694 = vpop.f32.mrf.mxu0
    %v695 = vadd.f32 %v551, %v694
    %v696 = vpop.f32.mrf.mxu0
    %697 = vdwg.mxu0
    %698 = vmax.xlane.f32.xlu0 %v620
    %v699 = vpop.xlane.xlu0 %698
    %700 = vmax.xlane.f32.xlu0 %v625
    %v701 = vpop.xlane.xlu0 %700
    %702 = vmax.xlane.f32.xlu0 %v630
    %v703 = vpop.xlane.xlu0 %702
    %704 = vmax.xlane.f32.xlu0 %v635
    %v705 = vpop.xlane.xlu0 %704
    %706 = vmax.xlane.f32.xlu0 %v640
    %v707 = vpop.xlane.xlu0 %706
    %708 = vmax.xlane.f32.xlu0 %v645
    %v709 = vpop.xlane.xlu0 %708
    %710 = vmax.xlane.f32.xlu0 %v650
    %v711 = vpop.xlane.xlu0 %710
    %712 = vmax.xlane.f32.xlu0 %v655
    %v713 = vpop.xlane.xlu0 %712
    %714 = vmax.xlane.f32.xlu0 %v660
    %v715 = vpop.xlane.xlu0 %714
    %716 = vmax.xlane.f32.xlu0 %v665
    %v717 = vpop.xlane.xlu0 %716
    %718 = vmax.xlane.f32.xlu0 %v670
    %v719 = vpop.xlane.xlu0 %718
    %720 = vmax.xlane.f32.xlu0 %v675
    %v721 = vpop.xlane.xlu0 %720
    %722 = vmax.xlane.f32.xlu0 %v680
    %v723 = vpop.xlane.xlu0 %722
    %724 = vmax.xlane.f32.xlu0 %v685
    %v725 = vpop.xlane.xlu0 %724
    %726 = vmax.xlane.f32.xlu0 %v690
    %v727 = vpop.xlane.xlu0 %726
    %728 = vmax.xlane.f32.xlu0 %v695
    %v729 = vpop.xlane.xlu0 %728
    %v730 = vsub.f32 %v620, %v699
    %v731 = vsub.f32 %v625, %v701
    %v732 = vsub.f32 %v630, %v703
    %v733 = vsub.f32 %v635, %v705
    %v734 = vsub.f32 %v640, %v707
    %v735 = vsub.f32 %v645, %v709
    %v736 = vsub.f32 %v650, %v711
    %v737 = vsub.f32 %v655, %v713
    %v738 = vsub.f32 %v660, %v715
    %v739 = vsub.f32 %v665, %v717
    %v740 = vsub.f32 %v670, %v719
    %v741 = vsub.f32 %v675, %v721
    %v742 = vsub.f32 %v680, %v723
    %v743 = vsub.f32 %v685, %v725
    %v744 = vsub.f32 %v690, %v727
    %v745 = vsub.f32 %v695, %v729
    %v746 = vmul.f32 %v730, 1.442695
    %v747 = vpow.pop %v746
    %v748 = vmul.f32 %v731, 1.442695
    %v749 = vpow.pop %v748
    %v750 = vmul.f32 %v732, 1.442695
    %v751 = vpow.pop %v750
    %v752 = vmul.f32 %v733, 1.442695
    %v753 = vpow.pop %v752
    %v754 = vmul.f32 %v734, 1.442695
    %v755 = vpow.pop %v754
    %v756 = vmul.f32 %v735, 1.442695
    %v757 = vpow.pop %v756
    %v758 = vmul.f32 %v736, 1.442695
    %v759 = vpow.pop %v758
    %v760 = vmul.f32 %v737, 1.442695
    %v761 = vpow.pop %v760
    %v762 = vmul.f32 %v738, 1.442695
    %v763 = vpow.pop %v762
    %v764 = vmul.f32 %v739, 1.442695
    %v765 = vpow.pop %v764
    %v766 = vmul.f32 %v740, 1.442695
    %v767 = vpow.pop %v766
    %v768 = vmul.f32 %v741, 1.442695
    %v769 = vpow.pop %v768
    %v770 = vmul.f32 %v742, 1.442695
    %v771 = vpow.pop %v770
    %v772 = vmul.f32 %v743, 1.442695
    %v773 = vpow.pop %v772
    %v774 = vmul.f32 %v744, 1.442695
    %v775 = vpow.pop %v774
    %v776 = vmul.f32 %v745, 1.442695
    %v777 = vpow.pop %v776
    %778 = vadd.xlane.f32.xlu0 %v747
    %v779 = vpop.xlane.xlu0 %778
    %780 = vadd.xlane.f32.xlu0 %v749
    %v781 = vpop.xlane.xlu0 %780
    %782 = vadd.xlane.f32.xlu0 %v751
    %v783 = vpop.xlane.xlu0 %782
    %784 = vadd.xlane.f32.xlu0 %v753
    %v785 = vpop.xlane.xlu0 %784
    %786 = vadd.xlane.f32.xlu0 %v755
    %v787 = vpop.xlane.xlu0 %786
    %788 = vadd.xlane.f32.xlu0 %v757
    %v789 = vpop.xlane.xlu0 %788
    %790 = vadd.xlane.f32.xlu0 %v759
    %v791 = vpop.xlane.xlu0 %790
    %792 = vadd.xlane.f32.xlu0 %v761
    %v793 = vpop.xlane.xlu0 %792
    %794 = vadd.xlane.f32.xlu0 %v763
    %v795 = vpop.xlane.xlu0 %794
    %796 = vadd.xlane.f32.xlu0 %v765
    %v797 = vpop.xlane.xlu0 %796
    %798 = vadd.xlane.f32.xlu0 %v767
    %v799 = vpop.xlane.xlu0 %798
    %800 = vadd.xlane.f32.xlu0 %v769
    %v801 = vpop.xlane.xlu0 %800
    %802 = vadd.xlane.f32.xlu0 %v771
    %v803 = vpop.xlane.xlu0 %802
    %804 = vadd.xlane.f32.xlu0 %v773
    %v805 = vpop.xlane.xlu0 %804
    %806 = vadd.xlane.f32.xlu0 %v775
    %v807 = vpop.xlane.xlu0 %806
    %808 = vadd.xlane.f32.xlu0 %v777
    %v809 = vpop.xlane.xlu0 %808
    %v810 = vlog2.pop %v779
    %v811 = vmul.f32 %v810, 0.6931472
    %v812 = vlog2.pop %v781
    %v813 = vmul.f32 %v812, 0.6931472
    %v814 = vlog2.pop %v783
    %v815 = vmul.f32 %v814, 0.6931472
    %v816 = vlog2.pop %v785
    %v817 = vmul.f32 %v816, 0.6931472
    %v818 = vlog2.pop %v787
    %v819 = vmul.f32 %v818, 0.6931472
    %v820 = vlog2.pop %v789
    %v821 = vmul.f32 %v820, 0.6931472
    %v822 = vlog2.pop %v791
    %v823 = vmul.f32 %v822, 0.6931472
    %v824 = vlog2.pop %v793
    %v825 = vmul.f32 %v824, 0.6931472
    %v826 = vlog2.pop %v795
    %v827 = vmul.f32 %v826, 0.6931472
    %v828 = vlog2.pop %v797
    %v829 = vmul.f32 %v828, 0.6931472
    %v830 = vlog2.pop %v799
    %v831 = vmul.f32 %v830, 0.6931472
    %v832 = vlog2.pop %v801
    %v833 = vmul.f32 %v832, 0.6931472
    %v834 = vlog2.pop %v803
    %v835 = vmul.f32 %v834, 0.6931472
    %v836 = vlog2.pop %v805
    %v837 = vmul.f32 %v836, 0.6931472
    %v838 = vlog2.pop %v807
    %v839 = vmul.f32 %v838, 0.6931472
    %v840 = vlog2.pop %v809
    %v841 = vmul.f32 %v840, 0.6931472
    %v842 = vsub.f32 %v730, %v811
    %v843 = vsub.f32 %v731, %v813
    %v844 = vsub.f32 %v732, %v815
    %v845 = vsub.f32 %v733, %v817
    %v846 = vsub.f32 %v734, %v819
    %v847 = vsub.f32 %v735, %v821
    %v848 = vsub.f32 %v736, %v823
    %v849 = vsub.f32 %v737, %v825
    %v850 = vsub.f32 %v738, %v827
    %v851 = vsub.f32 %v739, %v829
    %v852 = vsub.f32 %v740, %v831
    %v853 = vsub.f32 %v741, %v833
    %v854 = vsub.f32 %v742, %v835
    %v855 = vsub.f32 %v743, %v837
    %v856 = vsub.f32 %v744, %v839
    %v857 = vsub.f32 %v745, %v841
    %858 = vst [vmem:[#allocation10] sm:$0xff] %v842
    %859 = vst [vmem:[#allocation10 + $0x8] sm:$0xff] %v843
    %860 = vst [vmem:[#allocation10 + $0x10] sm:$0xff] %v844
    %861 = vst [vmem:[#allocation10 + $0x18] sm:$0xff] %v845
    %862 = vst [vmem:[#allocation10 + $0x20] sm:$0xff] %v846
    %863 = vst [vmem:[#allocation10 + $0x28] sm:$0xff] %v847
    %864 = vst [vmem:[#allocation10 + $0x30] sm:$0xff] %v848
    %865 = vst [vmem:[#allocation10 + $0x38] sm:$0xff] %v849
    %866 = vst [vmem:[#allocation10 + $0x40] sm:$0xff] %v850
    %867 = vst [vmem:[#allocation10 + $0x48] sm:$0xff] %v851
    %868 = vst [vmem:[#allocation10 + $0x50] sm:$0xff] %v852
    %869 = vst [vmem:[#allocation10 + $0x58] sm:$0xff] %v853
    %870 = vst [vmem:[#allocation10 + $0x60] sm:$0xff] %v854
    %871 = vst [vmem:[#allocation10 + $0x68] sm:$0xff] %v855
    %872 = vst [vmem:[#allocation10 + $0x70] sm:$0xff] %v856
    %873 = vst [vmem:[#allocation10 + $0x78] sm:$0xff] %v857
    // Predicated region
    $region46: #{tpu_custom_call.1} parent=1 // pred_check
      _
    $region47: #{tpu_custom_call.1} parent=1 // pred_check_branch
      %875 = sbr.rel (0) target = $region49
    $region48: #{tpu_custom_call.1} parent=1 // pred_region
      %s877 = ssub.s32 2048, 2048
      %878 = vsyncadd [#allocation4], %s877
      %s879 = sshll.u32 [#allocation10], 4
      %s880 = int_to_ptr.vmem [resolvable:$true] %s879
      %885 = dma.vmem_to_hbm [thread:$0]  %s880, 2048, %s7, [#allocation4], 128, 128, 8
    $region49: #{tpu_custom_call.1} parent=1 // pred_fallthru
      _
    // Predicated region
    $region50: #{tpu_custom_call.1} parent=1 // pred_check
      _
    $region51: #{tpu_custom_call.1} parent=1 // pred_check_branch
      %887 = sbr.rel (0) target = $region53
    $region52: #{tpu_custom_call.1} parent=1 // pred_region
      %888 = dma.done [#allocation4], 2048
    $region53: #{tpu_custom_call.1} parent=1 // pred_fallthru
      _
    %889 = vsyncpa [#allocation3], 1
    %890 = vsyncpa [#allocation6], 1
    %891 = vsyncpa [#allocation9], 1
    %892 = vsyncpa [#allocation4], 1

</llo_original>
